<compile_context>
chip_gen: v7x
topology: tpu7x:2x2x1
jax: 0.10.0
libtpu: 0.0.40
codegen_flags: <defaults>
</compile_context>

<pallas_src>
import jax
import jax.numpy as jnp
import numpy as np
from jax import lax
from jax.experimental import pallas as pl
from jax.experimental.pallas import tpu as pltpu

_ROWS, _LANES = 8, 128  # one f32 vreg-shaped output tile


def _make_learn_pose_kernel(has_init):
    """Build the kernel body; `has_init` selects the c2w @ init_c2w variant."""

    def kernel(cam_ref, r_ref, t_ref, *rest):
        if has_init:
            init_ref, out_ref = rest
        else:
            (out_ref,) = rest

        # ---- in-kernel gather: all scalar reads from SMEM --------------------
        cam = cam_ref[0]
        base = cam * 3
        r0 = r_ref[base + 0]
        r1 = r_ref[base + 1]
        r2 = r_ref[base + 2]
        t0 = t_ref[base + 0]
        t1 = t_ref[base + 1]
        t2 = t_ref[base + 2]

        # ---- Rodrigues coefficients (transcendentals on a broadcast vreg -> EUP)
        nsq = r0 * r0 + r1 * r1 + r2 * r2
        n_v = jnp.sqrt(jnp.full((_ROWS, _LANES), nsq, jnp.float32)) + 1e-15
        a_v = jnp.sin(n_v) / n_v                       # sin|r| / |r|
        b_v = (1.0 - jnp.cos(n_v)) / (n_v * n_v)       # (1 - cos|r|) / |r|^2

        # ---- scalar 3x3 blocks: K = skew(r), KK = K @ K ----------------------
        K = [[0.0, -r2, r1],
             [r2, 0.0, -r0],
             [-r1, r0, 0.0]]
        KK = [[-(r1 * r1 + r2 * r2), r0 * r1, r0 * r2],
              [r0 * r1, -(r0 * r0 + r2 * r2), r1 * r2],
              [r0 * r2, r1 * r2, -(r0 * r0 + r1 * r1)]]
        t = [t0, t1, t2]

        # out[i,j] = P[i,j] + a * Q[i,j] + b * S[i,j]
        if has_init:
            cbase = cam * 16
            M = [[init_ref[cbase + 4 * i + j] for j in range(4)] for i in range(4)]
            # c2w @ M expanded with R = I + a*K + b*KK:
            P = [[M[i][j] + t[i] * M[3][j] for j in range(4)] for i in range(3)]
            P.append([M[3][j] for j in range(4)])                       # row 3 = M row 3
            Q = [[K[i][0] * M[0][j] + K[i][1] * M[1][j] + K[i][2] * M[2][j]
                  for j in range(4)] for i in range(3)]
            S = [[KK[i][0] * M[0][j] + KK[i][1] * M[1][j] + KK[i][2] * M[2][j]
                  for j in range(4)] for i in range(3)]
        else:
            # c2w itself: [[I + a*K + b*KK, t], [0,0,0,1]]
            P = [[1.0, 0.0, 0.0, t0],
                 [0.0, 1.0, 0.0, t1],
                 [0.0, 0.0, 1.0, t2],
                 [0.0, 0.0, 0.0, 1.0]]
            Q = [[K[i][0], K[i][1], K[i][2], 0.0] for i in range(3)]
            S = [[KK[i][0], KK[i][1], KK[i][2], 0.0] for i in range(3)]

        # ---- masked assembly into the (8,128) output tile --------------------
        row = lax.broadcasted_iota(jnp.int32, (_ROWS, _LANES), 0)
        col = lax.broadcasted_iota(jnp.int32, (_ROWS, _LANES), 1)
        row_eq = [row == i for i in range(4)]
        col_eq = [col == j for j in range(4)]
        mask_cache = {}

        def mask(i, j):
            if (i, j) not in mask_cache:
                mask_cache[(i, j)] = row_eq[i] & col_eq[j]
            return mask_cache[(i, j)]

        def assemble(mat):
            acc = jnp.zeros((_ROWS, _LANES), jnp.float32)
            for i, row_vals in enumerate(mat):
                for j, v in enumerate(row_vals):
                    if isinstance(v, float) and v == 0.0:   # skip literal zeros
                        continue
                    acc = jnp.where(mask(i, j), v, acc)
            return acc

        out_ref[...] = assemble(P) + a_v * assemble(Q) + b_v * assemble(S)

    return kernel


_KERNEL_WITH_INIT = _make_learn_pose_kernel(True)
_KERNEL_NO_INIT = _make_learn_pose_kernel(False)


def learn_pose_forward(r_params, t_params, cam_id, init_c2w=None):
    """Pallas implementation of LearnPose.forward(cam_id). Returns (4,4) f32."""
    cam = jnp.full((1,), cam_id, jnp.int32)
    r_flat = jnp.asarray(r_params, jnp.float32).reshape(-1)   # (num_cams*3,)
    t_flat = jnp.asarray(t_params, jnp.float32).reshape(-1)   # (num_cams*3,)

    smem = pl.BlockSpec(memory_space=pltpu.MemorySpace.SMEM)
    vmem = pl.BlockSpec(memory_space=pltpu.MemorySpace.VMEM)

    if init_c2w is None:
        out_pad = pl.pallas_call(
            _KERNEL_NO_INIT,
            out_shape=jax.ShapeDtypeStruct((_ROWS, _LANES), jnp.float32),
            in_specs=[smem, smem, smem],
            out_specs=vmem,
        )(cam, r_flat, t_flat)
    else:
        init_flat = jnp.asarray(init_c2w, jnp.float32).reshape(-1)  # (num_cams*16,)
        out_pad = pl.pallas_call(
            _KERNEL_WITH_INIT,
            out_shape=jax.ShapeDtypeStruct((_ROWS, _LANES), jnp.float32),
            in_specs=[smem, smem, smem, smem],
            out_specs=vmem,
        )(cam, r_flat, t_flat, init_flat)
    return out_pad[:4, :4]


def _ref_forward(r_params, t_params, cam_id, init_c2w):
    """Pure numpy reference of the PyTorch forward."""
    r = np.asarray(r_params, np.float32)[cam_id]
    t = np.asarray(t_params, np.float32)[cam_id]
    K = np.array([[0.0, -r[2], r[1]],
                  [r[2], 0.0, -r[0]],
                  [-r[1], r[0], 0.0]], np.float32)
    n = np.linalg.norm(r) + 1e-15
    R = (np.eye(3, dtype=np.float32)
         + (np.sin(n) / n) * K
         + ((1.0 - np.cos(n)) / n ** 2) * (K @ K))
    c2w = np.eye(4, dtype=np.float32)
    c2w[:3, :3] = R
    c2w[:3, 3] = t
    if init_c2w is not None:
        c2w = c2w @ np.asarray(init_c2w, np.float32)[cam_id]
    return c2w


if __name__ == "__main__":
    num_cams = 8
    cam_id = 3

    key = jax.random.PRNGKey(0)
    k_r, k_t, k_init = jax.random.split(key, 3)
    # Module __init__ uses zeros for r/t; use small deterministic perturbations
    # here so the Rodrigues path is actually exercised (synthetic "learned" state).
    r_params = 0.1 * jax.random.normal(k_r, (num_cams, 3), jnp.float32)
    t_params = jax.random.normal(k_t, (num_cams, 3), jnp.float32)
    init_c2w = jax.random.normal(k_init, (num_cams, 4, 4), jnp.float32)

    out = jax.block_until_ready(learn_pose_forward(r_params, t_params, cam_id, init_c2w))
    ref = _ref_forward(np.asarray(r_params), np.asarray(t_params), cam_id,
                       np.asarray(init_c2w))
    assert out.shape == (4, 4) and out.dtype == jnp.float32
    np.testing.assert_allclose(np.asarray(out), ref, rtol=1e-5, atol=1e-5)

    # also check the init_c2w=None branch (returns c2w directly)
    out2 = jax.block_until_ready(learn_pose_forward(r_params, t_params, cam_id, None))
    ref2 = _ref_forward(np.asarray(r_params), np.asarray(t_params), cam_id, None)
    np.testing.assert_allclose(np.asarray(out2), ref2, rtol=1e-5, atol=1e-5)

    # exercise the r == 0 (module-init) state as well
    zeros = jnp.zeros((num_cams, 3), jnp.float32)
    out3 = jax.block_until_ready(learn_pose_forward(zeros, zeros, 0, init_c2w))
    ref3 = _ref_forward(np.zeros((num_cams, 3)), np.zeros((num_cams, 3)), 0,
                        np.asarray(init_c2w))
    np.testing.assert_allclose(np.asarray(out3), ref3, rtol=1e-5, atol=1e-5)

    print("KERNEL_OK")
</pallas_src>

<mosaic_0001>
module attributes {stable_mosaic.version = 11 : i64} {
  func.func @kernel(%arg0: memref<1xi32, #tpu.memory_space<smem>>, %arg1: memref<24xf32, #tpu.memory_space<smem>>, %arg2: memref<24xf32, #tpu.memory_space<smem>>, %arg3: memref<128xf32, #tpu.memory_space<smem>>, %arg4: memref<8x128xf32, #tpu.memory_space<vmem>>) attributes {dimension_semantics = [], scalar_prefetch = 0 : i64, scratch_operands = 0 : i64, tpu.core_type = #tpu.core_type<tc>} {
    %c0 = arith.constant 0 : index
    %0 = memref.load %arg0[%c0] : memref<1xi32, #tpu.memory_space<smem>>
    %c3_i32 = arith.constant 3 : i32
    %1 = arith.muli %0, %c3_i32 : i32
    %c0_i32 = arith.constant 0 : i32
    %2 = arith.addi %1, %c0_i32 : i32
    %3 = arith.index_cast %2 : i32 to index
    %4 = memref.load %arg1[%3] : memref<24xf32, #tpu.memory_space<smem>>
    %c1_i32 = arith.constant 1 : i32
    %5 = arith.addi %1, %c1_i32 : i32
    %6 = arith.index_cast %5 : i32 to index
    %7 = memref.load %arg1[%6] : memref<24xf32, #tpu.memory_space<smem>>
    %c2_i32 = arith.constant 2 : i32
    %8 = arith.addi %1, %c2_i32 : i32
    %9 = arith.index_cast %8 : i32 to index
    %10 = memref.load %arg1[%9] : memref<24xf32, #tpu.memory_space<smem>>
    %c0_i32_0 = arith.constant 0 : i32
    %11 = arith.addi %1, %c0_i32_0 : i32
    %12 = arith.index_cast %11 : i32 to index
    %13 = memref.load %arg2[%12] : memref<24xf32, #tpu.memory_space<smem>>
    %c1_i32_1 = arith.constant 1 : i32
    %14 = arith.addi %1, %c1_i32_1 : i32
    %15 = arith.index_cast %14 : i32 to index
    %16 = memref.load %arg2[%15] : memref<24xf32, #tpu.memory_space<smem>>
    %c2_i32_2 = arith.constant 2 : i32
    %17 = arith.addi %1, %c2_i32_2 : i32
    %18 = arith.index_cast %17 : i32 to index
    %19 = memref.load %arg2[%18] : memref<24xf32, #tpu.memory_space<smem>>
    %20 = arith.mulf %4, %4 : f32
    %21 = arith.mulf %7, %7 : f32
    %22 = arith.addf %20, %21 : f32
    %23 = arith.mulf %10, %10 : f32
    %24 = arith.addf %22, %23 : f32
    %25 = vector.broadcast %24 : f32 to vector<8x128xf32>
    %26 = math.sqrt %25 : vector<8x128xf32>
    %cst = arith.constant 1.000000e-15 : f32
    %27 = vector.broadcast %cst : f32 to vector<8x128xf32>
    %28 = arith.addf %26, %27 : vector<8x128xf32>
    %29 = math.sin %28 : vector<8x128xf32>
    %30 = arith.divf %29, %28 : vector<8x128xf32>
    %31 = math.cos %28 : vector<8x128xf32>
    %cst_3 = arith.constant 1.000000e+00 : f32
    %32 = vector.broadcast %cst_3 : f32 to vector<8x128xf32>
    %33 = arith.subf %32, %31 : vector<8x128xf32>
    %34 = arith.mulf %28, %28 : vector<8x128xf32>
    %35 = arith.divf %33, %34 : vector<8x128xf32>
    %cst_4 = arith.constant 0.000000e+00 : f32
    %36 = arith.subf %cst_4, %10 : f32
    %cst_5 = arith.constant 0.000000e+00 : f32
    %37 = arith.subf %cst_5, %4 : f32
    %cst_6 = arith.constant 0.000000e+00 : f32
    %38 = arith.subf %cst_6, %7 : f32
    %39 = arith.mulf %7, %7 : f32
    %40 = arith.mulf %10, %10 : f32
    %41 = arith.addf %39, %40 : f32
    %cst_7 = arith.constant 0.000000e+00 : f32
    %42 = arith.subf %cst_7, %41 : f32
    %43 = arith.mulf %4, %7 : f32
    %44 = arith.mulf %4, %10 : f32
    %45 = arith.mulf %4, %7 : f32
    %46 = arith.mulf %4, %4 : f32
    %47 = arith.mulf %10, %10 : f32
    %48 = arith.addf %46, %47 : f32
    %cst_8 = arith.constant 0.000000e+00 : f32
    %49 = arith.subf %cst_8, %48 : f32
    %50 = arith.mulf %7, %10 : f32
    %51 = arith.mulf %4, %10 : f32
    %52 = arith.mulf %7, %10 : f32
    %53 = arith.mulf %4, %4 : f32
    %54 = arith.mulf %7, %7 : f32
    %55 = arith.addf %53, %54 : f32
    %cst_9 = arith.constant 0.000000e+00 : f32
    %56 = arith.subf %cst_9, %55 : f32
    %c16_i32 = arith.constant 16 : i32
    %57 = arith.muli %0, %c16_i32 : i32
    %c0_i32_10 = arith.constant 0 : i32
    %58 = arith.addi %57, %c0_i32_10 : i32
    %c0_i32_11 = arith.constant 0 : i32
    %59 = arith.addi %58, %c0_i32_11 : i32
    %60 = arith.index_cast %59 : i32 to index
    %61 = memref.load %arg3[%60] : memref<128xf32, #tpu.memory_space<smem>>
    %c0_i32_12 = arith.constant 0 : i32
    %62 = arith.addi %57, %c0_i32_12 : i32
    %c1_i32_13 = arith.constant 1 : i32
    %63 = arith.addi %62, %c1_i32_13 : i32
    %64 = arith.index_cast %63 : i32 to index
    %65 = memref.load %arg3[%64] : memref<128xf32, #tpu.memory_space<smem>>
    %c0_i32_14 = arith.constant 0 : i32
    %66 = arith.addi %57, %c0_i32_14 : i32
    %c2_i32_15 = arith.constant 2 : i32
    %67 = arith.addi %66, %c2_i32_15 : i32
    %68 = arith.index_cast %67 : i32 to index
    %69 = memref.load %arg3[%68] : memref<128xf32, #tpu.memory_space<smem>>
    %c0_i32_16 = arith.constant 0 : i32
    %70 = arith.addi %57, %c0_i32_16 : i32
    %c3_i32_17 = arith.constant 3 : i32
    %71 = arith.addi %70, %c3_i32_17 : i32
    %72 = arith.index_cast %71 : i32 to index
    %73 = memref.load %arg3[%72] : memref<128xf32, #tpu.memory_space<smem>>
    %c4_i32 = arith.constant 4 : i32
    %74 = arith.addi %57, %c4_i32 : i32
    %c0_i32_18 = arith.constant 0 : i32
    %75 = arith.addi %74, %c0_i32_18 : i32
    %76 = arith.index_cast %75 : i32 to index
    %77 = memref.load %arg3[%76] : memref<128xf32, #tpu.memory_space<smem>>
    %c4_i32_19 = arith.constant 4 : i32
    %78 = arith.addi %57, %c4_i32_19 : i32
    %c1_i32_20 = arith.constant 1 : i32
    %79 = arith.addi %78, %c1_i32_20 : i32
    %80 = arith.index_cast %79 : i32 to index
    %81 = memref.load %arg3[%80] : memref<128xf32, #tpu.memory_space<smem>>
    %c4_i32_21 = arith.constant 4 : i32
    %82 = arith.addi %57, %c4_i32_21 : i32
    %c2_i32_22 = arith.constant 2 : i32
    %83 = arith.addi %82, %c2_i32_22 : i32
    %84 = arith.index_cast %83 : i32 to index
    %85 = memref.load %arg3[%84] : memref<128xf32, #tpu.memory_space<smem>>
    %c4_i32_23 = arith.constant 4 : i32
    %86 = arith.addi %57, %c4_i32_23 : i32
    %c3_i32_24 = arith.constant 3 : i32
    %87 = arith.addi %86, %c3_i32_24 : i32
    %88 = arith.index_cast %87 : i32 to index
    %89 = memref.load %arg3[%88] : memref<128xf32, #tpu.memory_space<smem>>
    %c8_i32 = arith.constant 8 : i32
    %90 = arith.addi %57, %c8_i32 : i32
    %c0_i32_25 = arith.constant 0 : i32
    %91 = arith.addi %90, %c0_i32_25 : i32
    %92 = arith.index_cast %91 : i32 to index
    %93 = memref.load %arg3[%92] : memref<128xf32, #tpu.memory_space<smem>>
    %c8_i32_26 = arith.constant 8 : i32
    %94 = arith.addi %57, %c8_i32_26 : i32
    %c1_i32_27 = arith.constant 1 : i32
    %95 = arith.addi %94, %c1_i32_27 : i32
    %96 = arith.index_cast %95 : i32 to index
    %97 = memref.load %arg3[%96] : memref<128xf32, #tpu.memory_space<smem>>
    %c8_i32_28 = arith.constant 8 : i32
    %98 = arith.addi %57, %c8_i32_28 : i32
    %c2_i32_29 = arith.constant 2 : i32
    %99 = arith.addi %98, %c2_i32_29 : i32
    %100 = arith.index_cast %99 : i32 to index
    %101 = memref.load %arg3[%100] : memref<128xf32, #tpu.memory_space<smem>>
    %c8_i32_30 = arith.constant 8 : i32
    %102 = arith.addi %57, %c8_i32_30 : i32
    %c3_i32_31 = arith.constant 3 : i32
    %103 = arith.addi %102, %c3_i32_31 : i32
    %104 = arith.index_cast %103 : i32 to index
    %105 = memref.load %arg3[%104] : memref<128xf32, #tpu.memory_space<smem>>
    %c12_i32 = arith.constant 12 : i32
    %106 = arith.addi %57, %c12_i32 : i32
    %c0_i32_32 = arith.constant 0 : i32
    %107 = arith.addi %106, %c0_i32_32 : i32
    %108 = arith.index_cast %107 : i32 to index
    %109 = memref.load %arg3[%108] : memref<128xf32, #tpu.memory_space<smem>>
    %c12_i32_33 = arith.constant 12 : i32
    %110 = arith.addi %57, %c12_i32_33 : i32
    %c1_i32_34 = arith.constant 1 : i32
    %111 = arith.addi %110, %c1_i32_34 : i32
    %112 = arith.index_cast %111 : i32 to index
    %113 = memref.load %arg3[%112] : memref<128xf32, #tpu.memory_space<smem>>
    %c12_i32_35 = arith.constant 12 : i32
    %114 = arith.addi %57, %c12_i32_35 : i32
    %c2_i32_36 = arith.constant 2 : i32
    %115 = arith.addi %114, %c2_i32_36 : i32
    %116 = arith.index_cast %115 : i32 to index
    %117 = memref.load %arg3[%116] : memref<128xf32, #tpu.memory_space<smem>>
    %c12_i32_37 = arith.constant 12 : i32
    %118 = arith.addi %57, %c12_i32_37 : i32
    %c3_i32_38 = arith.constant 3 : i32
    %119 = arith.addi %118, %c3_i32_38 : i32
    %120 = arith.index_cast %119 : i32 to index
    %121 = memref.load %arg3[%120] : memref<128xf32, #tpu.memory_space<smem>>
    %122 = arith.mulf %13, %109 : f32
    %123 = arith.addf %61, %122 : f32
    %124 = arith.mulf %13, %113 : f32
    %125 = arith.addf %65, %124 : f32
    %126 = arith.mulf %13, %117 : f32
    %127 = arith.addf %69, %126 : f32
    %128 = arith.mulf %13, %121 : f32
    %129 = arith.addf %73, %128 : f32
    %130 = arith.mulf %16, %109 : f32
    %131 = arith.addf %77, %130 : f32
    %132 = arith.mulf %16, %113 : f32
    %133 = arith.addf %81, %132 : f32
    %134 = arith.mulf %16, %117 : f32
    %135 = arith.addf %85, %134 : f32
    %136 = arith.mulf %16, %121 : f32
    %137 = arith.addf %89, %136 : f32
    %138 = arith.mulf %19, %109 : f32
    %139 = arith.addf %93, %138 : f32
    %140 = arith.mulf %19, %113 : f32
    %141 = arith.addf %97, %140 : f32
    %142 = arith.mulf %19, %117 : f32
    %143 = arith.addf %101, %142 : f32
    %144 = arith.mulf %19, %121 : f32
    %145 = arith.addf %105, %144 : f32
    %cst_39 = arith.constant 0.000000e+00 : f32
    %146 = arith.mulf %cst_39, %61 : f32
    %147 = arith.mulf %36, %77 : f32
    %148 = arith.addf %146, %147 : f32
    %149 = arith.mulf %7, %93 : f32
    %150 = arith.addf %148, %149 : f32
    %cst_40 = arith.constant 0.000000e+00 : f32
    %151 = arith.mulf %cst_40, %65 : f32
    %152 = arith.mulf %36, %81 : f32
    %153 = arith.addf %151, %152 : f32
    %154 = arith.mulf %7, %97 : f32
    %155 = arith.addf %153, %154 : f32
    %cst_41 = arith.constant 0.000000e+00 : f32
    %156 = arith.mulf %cst_41, %69 : f32
    %157 = arith.mulf %36, %85 : f32
    %158 = arith.addf %156, %157 : f32
    %159 = arith.mulf %7, %101 : f32
    %160 = arith.addf %158, %159 : f32
    %cst_42 = arith.constant 0.000000e+00 : f32
    %161 = arith.mulf %cst_42, %73 : f32
    %162 = arith.mulf %36, %89 : f32
    %163 = arith.addf %161, %162 : f32
    %164 = arith.mulf %7, %105 : f32
    %165 = arith.addf %163, %164 : f32
    %166 = arith.mulf %10, %61 : f32
    %cst_43 = arith.constant 0.000000e+00 : f32
    %167 = arith.mulf %cst_43, %77 : f32
    %168 = arith.addf %166, %167 : f32
    %169 = arith.mulf %37, %93 : f32
    %170 = arith.addf %168, %169 : f32
    %171 = arith.mulf %10, %65 : f32
    %cst_44 = arith.constant 0.000000e+00 : f32
    %172 = arith.mulf %cst_44, %81 : f32
    %173 = arith.addf %171, %172 : f32
    %174 = arith.mulf %37, %97 : f32
    %175 = arith.addf %173, %174 : f32
    %176 = arith.mulf %10, %69 : f32
    %cst_45 = arith.constant 0.000000e+00 : f32
    %177 = arith.mulf %cst_45, %85 : f32
    %178 = arith.addf %176, %177 : f32
    %179 = arith.mulf %37, %101 : f32
    %180 = arith.addf %178, %179 : f32
    %181 = arith.mulf %10, %73 : f32
    %cst_46 = arith.constant 0.000000e+00 : f32
    %182 = arith.mulf %cst_46, %89 : f32
    %183 = arith.addf %181, %182 : f32
    %184 = arith.mulf %37, %105 : f32
    %185 = arith.addf %183, %184 : f32
    %186 = arith.mulf %38, %61 : f32
    %187 = arith.mulf %4, %77 : f32
    %188 = arith.addf %186, %187 : f32
    %cst_47 = arith.constant 0.000000e+00 : f32
    %189 = arith.mulf %cst_47, %93 : f32
    %190 = arith.addf %188, %189 : f32
    %191 = arith.mulf %38, %65 : f32
    %192 = arith.mulf %4, %81 : f32
    %193 = arith.addf %191, %192 : f32
    %cst_48 = arith.constant 0.000000e+00 : f32
    %194 = arith.mulf %cst_48, %97 : f32
    %195 = arith.addf %193, %194 : f32
    %196 = arith.mulf %38, %69 : f32
    %197 = arith.mulf %4, %85 : f32
    %198 = arith.addf %196, %197 : f32
    %cst_49 = arith.constant 0.000000e+00 : f32
    %199 = arith.mulf %cst_49, %101 : f32
    %200 = arith.addf %198, %199 : f32
    %201 = arith.mulf %38, %73 : f32
    %202 = arith.mulf %4, %89 : f32
    %203 = arith.addf %201, %202 : f32
    %cst_50 = arith.constant 0.000000e+00 : f32
    %204 = arith.mulf %cst_50, %105 : f32
    %205 = arith.addf %203, %204 : f32
    %206 = arith.mulf %42, %61 : f32
    %207 = arith.mulf %43, %77 : f32
    %208 = arith.addf %206, %207 : f32
    %209 = arith.mulf %44, %93 : f32
    %210 = arith.addf %208, %209 : f32
    %211 = arith.mulf %42, %65 : f32
    %212 = arith.mulf %43, %81 : f32
    %213 = arith.addf %211, %212 : f32
    %214 = arith.mulf %44, %97 : f32
    %215 = arith.addf %213, %214 : f32
    %216 = arith.mulf %42, %69 : f32
    %217 = arith.mulf %43, %85 : f32
    %218 = arith.addf %216, %217 : f32
    %219 = arith.mulf %44, %101 : f32
    %220 = arith.addf %218, %219 : f32
    %221 = arith.mulf %42, %73 : f32
    %222 = arith.mulf %43, %89 : f32
    %223 = arith.addf %221, %222 : f32
    %224 = arith.mulf %44, %105 : f32
    %225 = arith.addf %223, %224 : f32
    %226 = arith.mulf %45, %61 : f32
    %227 = arith.mulf %49, %77 : f32
    %228 = arith.addf %226, %227 : f32
    %229 = arith.mulf %50, %93 : f32
    %230 = arith.addf %228, %229 : f32
    %231 = arith.mulf %45, %65 : f32
    %232 = arith.mulf %49, %81 : f32
    %233 = arith.addf %231, %232 : f32
    %234 = arith.mulf %50, %97 : f32
    %235 = arith.addf %233, %234 : f32
    %236 = arith.mulf %45, %69 : f32
    %237 = arith.mulf %49, %85 : f32
    %238 = arith.addf %236, %237 : f32
    %239 = arith.mulf %50, %101 : f32
    %240 = arith.addf %238, %239 : f32
    %241 = arith.mulf %45, %73 : f32
    %242 = arith.mulf %49, %89 : f32
    %243 = arith.addf %241, %242 : f32
    %244 = arith.mulf %50, %105 : f32
    %245 = arith.addf %243, %244 : f32
    %246 = arith.mulf %51, %61 : f32
    %247 = arith.mulf %52, %77 : f32
    %248 = arith.addf %246, %247 : f32
    %249 = arith.mulf %56, %93 : f32
    %250 = arith.addf %248, %249 : f32
    %251 = arith.mulf %51, %65 : f32
    %252 = arith.mulf %52, %81 : f32
    %253 = arith.addf %251, %252 : f32
    %254 = arith.mulf %56, %97 : f32
    %255 = arith.addf %253, %254 : f32
    %256 = arith.mulf %51, %69 : f32
    %257 = arith.mulf %52, %85 : f32
    %258 = arith.addf %256, %257 : f32
    %259 = arith.mulf %56, %101 : f32
    %260 = arith.addf %258, %259 : f32
    %261 = arith.mulf %51, %73 : f32
    %262 = arith.mulf %52, %89 : f32
    %263 = arith.addf %261, %262 : f32
    %264 = arith.mulf %56, %105 : f32
    %265 = arith.addf %263, %264 : f32
    %266 = tpu.iota {dimensions = array<i32: 0>} : vector<8x128xi32>
    %267 = tpu.iota {dimensions = array<i32: 1>} : vector<8x128xi32>
    %c0_i32_51 = arith.constant 0 : i32
    %268 = vector.broadcast %c0_i32_51 : i32 to vector<8x128xi32>
    %269 = arith.cmpi eq, %266, %268 : vector<8x128xi32>
    %c1_i32_52 = arith.constant 1 : i32
    %270 = vector.broadcast %c1_i32_52 : i32 to vector<8x128xi32>
    %271 = arith.cmpi eq, %266, %270 : vector<8x128xi32>
    %c2_i32_53 = arith.constant 2 : i32
    %272 = vector.broadcast %c2_i32_53 : i32 to vector<8x128xi32>
    %273 = arith.cmpi eq, %266, %272 : vector<8x128xi32>
    %c3_i32_54 = arith.constant 3 : i32
    %274 = vector.broadcast %c3_i32_54 : i32 to vector<8x128xi32>
    %275 = arith.cmpi eq, %266, %274 : vector<8x128xi32>
    %c0_i32_55 = arith.constant 0 : i32
    %276 = vector.broadcast %c0_i32_55 : i32 to vector<8x128xi32>
    %277 = arith.cmpi eq, %267, %276 : vector<8x128xi32>
    %c1_i32_56 = arith.constant 1 : i32
    %278 = vector.broadcast %c1_i32_56 : i32 to vector<8x128xi32>
    %279 = arith.cmpi eq, %267, %278 : vector<8x128xi32>
    %c2_i32_57 = arith.constant 2 : i32
    %280 = vector.broadcast %c2_i32_57 : i32 to vector<8x128xi32>
    %281 = arith.cmpi eq, %267, %280 : vector<8x128xi32>
    %c3_i32_58 = arith.constant 3 : i32
    %282 = vector.broadcast %c3_i32_58 : i32 to vector<8x128xi32>
    %283 = arith.cmpi eq, %267, %282 : vector<8x128xi32>
    %cst_59 = arith.constant 0.000000e+00 : f32
    %284 = vector.broadcast %cst_59 : f32 to vector<8x128xf32>
    %285 = arith.andi %269, %277 : vector<8x128xi1>
    %286 = vector.broadcast %123 : f32 to vector<8x128xf32>
    %287 = arith.select %285, %286, %284 : vector<8x128xi1>, vector<8x128xf32>
    %288 = arith.andi %269, %279 : vector<8x128xi1>
    %289 = vector.broadcast %125 : f32 to vector<8x128xf32>
    %290 = arith.select %288, %289, %287 : vector<8x128xi1>, vector<8x128xf32>
    %291 = arith.andi %269, %281 : vector<8x128xi1>
    %292 = vector.broadcast %127 : f32 to vector<8x128xf32>
    %293 = arith.select %291, %292, %290 : vector<8x128xi1>, vector<8x128xf32>
    %294 = arith.andi %269, %283 : vector<8x128xi1>
    %295 = vector.broadcast %129 : f32 to vector<8x128xf32>
    %296 = arith.select %294, %295, %293 : vector<8x128xi1>, vector<8x128xf32>
    %297 = arith.andi %271, %277 : vector<8x128xi1>
    %298 = vector.broadcast %131 : f32 to vector<8x128xf32>
    %299 = arith.select %297, %298, %296 : vector<8x128xi1>, vector<8x128xf32>
    %300 = arith.andi %271, %279 : vector<8x128xi1>
    %301 = vector.broadcast %133 : f32 to vector<8x128xf32>
    %302 = arith.select %300, %301, %299 : vector<8x128xi1>, vector<8x128xf32>
    %303 = arith.andi %271, %281 : vector<8x128xi1>
    %304 = vector.broadcast %135 : f32 to vector<8x128xf32>
    %305 = arith.select %303, %304, %302 : vector<8x128xi1>, vector<8x128xf32>
    %306 = arith.andi %271, %283 : vector<8x128xi1>
    %307 = vector.broadcast %137 : f32 to vector<8x128xf32>
    %308 = arith.select %306, %307, %305 : vector<8x128xi1>, vector<8x128xf32>
    %309 = arith.andi %273, %277 : vector<8x128xi1>
    %310 = vector.broadcast %139 : f32 to vector<8x128xf32>
    %311 = arith.select %309, %310, %308 : vector<8x128xi1>, vector<8x128xf32>
    %312 = arith.andi %273, %279 : vector<8x128xi1>
    %313 = vector.broadcast %141 : f32 to vector<8x128xf32>
    %314 = arith.select %312, %313, %311 : vector<8x128xi1>, vector<8x128xf32>
    %315 = arith.andi %273, %281 : vector<8x128xi1>
    %316 = vector.broadcast %143 : f32 to vector<8x128xf32>
    %317 = arith.select %315, %316, %314 : vector<8x128xi1>, vector<8x128xf32>
    %318 = arith.andi %273, %283 : vector<8x128xi1>
    %319 = vector.broadcast %145 : f32 to vector<8x128xf32>
    %320 = arith.select %318, %319, %317 : vector<8x128xi1>, vector<8x128xf32>
    %321 = arith.andi %275, %277 : vector<8x128xi1>
    %322 = vector.broadcast %109 : f32 to vector<8x128xf32>
    %323 = arith.select %321, %322, %320 : vector<8x128xi1>, vector<8x128xf32>
    %324 = arith.andi %275, %279 : vector<8x128xi1>
    %325 = vector.broadcast %113 : f32 to vector<8x128xf32>
    %326 = arith.select %324, %325, %323 : vector<8x128xi1>, vector<8x128xf32>
    %327 = arith.andi %275, %281 : vector<8x128xi1>
    %328 = vector.broadcast %117 : f32 to vector<8x128xf32>
    %329 = arith.select %327, %328, %326 : vector<8x128xi1>, vector<8x128xf32>
    %330 = arith.andi %275, %283 : vector<8x128xi1>
    %331 = vector.broadcast %121 : f32 to vector<8x128xf32>
    %332 = arith.select %330, %331, %329 : vector<8x128xi1>, vector<8x128xf32>
    %cst_60 = arith.constant 0.000000e+00 : f32
    %333 = vector.broadcast %cst_60 : f32 to vector<8x128xf32>
    %334 = vector.broadcast %150 : f32 to vector<8x128xf32>
    %335 = arith.select %285, %334, %333 : vector<8x128xi1>, vector<8x128xf32>
    %336 = vector.broadcast %155 : f32 to vector<8x128xf32>
    %337 = arith.select %288, %336, %335 : vector<8x128xi1>, vector<8x128xf32>
    %338 = vector.broadcast %160 : f32 to vector<8x128xf32>
    %339 = arith.select %291, %338, %337 : vector<8x128xi1>, vector<8x128xf32>
    %340 = vector.broadcast %165 : f32 to vector<8x128xf32>
    %341 = arith.select %294, %340, %339 : vector<8x128xi1>, vector<8x128xf32>
    %342 = vector.broadcast %170 : f32 to vector<8x128xf32>
    %343 = arith.select %297, %342, %341 : vector<8x128xi1>, vector<8x128xf32>
    %344 = vector.broadcast %175 : f32 to vector<8x128xf32>
    %345 = arith.select %300, %344, %343 : vector<8x128xi1>, vector<8x128xf32>
    %346 = vector.broadcast %180 : f32 to vector<8x128xf32>
    %347 = arith.select %303, %346, %345 : vector<8x128xi1>, vector<8x128xf32>
    %348 = vector.broadcast %185 : f32 to vector<8x128xf32>
    %349 = arith.select %306, %348, %347 : vector<8x128xi1>, vector<8x128xf32>
    %350 = vector.broadcast %190 : f32 to vector<8x128xf32>
    %351 = arith.select %309, %350, %349 : vector<8x128xi1>, vector<8x128xf32>
    %352 = vector.broadcast %195 : f32 to vector<8x128xf32>
    %353 = arith.select %312, %352, %351 : vector<8x128xi1>, vector<8x128xf32>
    %354 = vector.broadcast %200 : f32 to vector<8x128xf32>
    %355 = arith.select %315, %354, %353 : vector<8x128xi1>, vector<8x128xf32>
    %356 = vector.broadcast %205 : f32 to vector<8x128xf32>
    %357 = arith.select %318, %356, %355 : vector<8x128xi1>, vector<8x128xf32>
    %358 = arith.mulf %30, %357 : vector<8x128xf32>
    %359 = arith.addf %332, %358 : vector<8x128xf32>
    %cst_61 = arith.constant 0.000000e+00 : f32
    %360 = vector.broadcast %cst_61 : f32 to vector<8x128xf32>
    %361 = vector.broadcast %210 : f32 to vector<8x128xf32>
    %362 = arith.select %285, %361, %360 : vector<8x128xi1>, vector<8x128xf32>
    %363 = vector.broadcast %215 : f32 to vector<8x128xf32>
    %364 = arith.select %288, %363, %362 : vector<8x128xi1>, vector<8x128xf32>
    %365 = vector.broadcast %220 : f32 to vector<8x128xf32>
    %366 = arith.select %291, %365, %364 : vector<8x128xi1>, vector<8x128xf32>
    %367 = vector.broadcast %225 : f32 to vector<8x128xf32>
    %368 = arith.select %294, %367, %366 : vector<8x128xi1>, vector<8x128xf32>
    %369 = vector.broadcast %230 : f32 to vector<8x128xf32>
    %370 = arith.select %297, %369, %368 : vector<8x128xi1>, vector<8x128xf32>
    %371 = vector.broadcast %235 : f32 to vector<8x128xf32>
    %372 = arith.select %300, %371, %370 : vector<8x128xi1>, vector<8x128xf32>
    %373 = vector.broadcast %240 : f32 to vector<8x128xf32>
    %374 = arith.select %303, %373, %372 : vector<8x128xi1>, vector<8x128xf32>
    %375 = vector.broadcast %245 : f32 to vector<8x128xf32>
    %376 = arith.select %306, %375, %374 : vector<8x128xi1>, vector<8x128xf32>
    %377 = vector.broadcast %250 : f32 to vector<8x128xf32>
    %378 = arith.select %309, %377, %376 : vector<8x128xi1>, vector<8x128xf32>
    %379 = vector.broadcast %255 : f32 to vector<8x128xf32>
    %380 = arith.select %312, %379, %378 : vector<8x128xi1>, vector<8x128xf32>
    %381 = vector.broadcast %260 : f32 to vector<8x128xf32>
    %382 = arith.select %315, %381, %380 : vector<8x128xi1>, vector<8x128xf32>
    %383 = vector.broadcast %265 : f32 to vector<8x128xf32>
    %384 = arith.select %318, %383, %382 : vector<8x128xi1>, vector<8x128xf32>
    %385 = arith.mulf %35, %384 : vector<8x128xf32>
    %386 = arith.addf %359, %385 : vector<8x128xf32>
    %c0_62 = arith.constant 0 : index
    %c0_63 = arith.constant 0 : index
    %387 = vector.load %arg4[%c0_62, %c0_63] : memref<8x128xf32, #tpu.memory_space<vmem>>, vector<8x128xf32>
    tpu.vector_store %arg4[%c0_62, %c0_63], %386 {strides = array<i32>} : memref<8x128xf32, #tpu.memory_space<vmem>>, vector<8x128xf32>,
    return
  }
}

</mosaic_0001>

<llo_original>
// kernel: tpu_custom_call.1
$region0: #{tpu_custom_call.1}
  #allocation0 [shape = 'u32[]', space=smem, size = 0x4, offset = 0x4, fixed_abs, tag = 'smem constant byte address 0x4 - core index']
  #allocation1 [shape = 'u32[144,128]{1,0:T(1,128)}', space=vmem, size = 0x12000, scoped, tag = 'internal scratch']
  #allocation2 [shape = 's32[1]{0:T(128)S(6)}', space=smem, size = 0x200, scoped, tag = 'scoped memory for tpu_custom_call.1']
  %s0 = inlined_call_operand.<no memory space> [shape: s32[1], index: 0, kind: input, shape index: {}]
  %s1 = inlined_call_operand.vmem [shape: f32[24], index: 1, kind: input, shape index: {}]
  %s2 = inlined_call_operand.vmem [shape: f32[24], index: 2, kind: input, shape index: {}]
  %s3 = inlined_call_operand.vmem [shape: f32[128], index: 3, kind: input, shape index: {}]
  %s4 = inlined_call_operand.hbm [shape: f32[8,128], index: 4, kind: output, shape index: {}]
  %s5 = sld [smem:[#allocation0]]
  $region38: #{tpu_custom_call.1} parent=0
    _
  %s7 = ssub.s32 1, %s5
  %s8 = scalar_select 0, %s7, %s5
  %9 = sst [smem:[#allocation2]] %s0
  $region1: #{tpu_custom_call.1} parent=0
    #allocation3 [shape = 'u8[512]{0}', space=smem, size = 0x200, scoped, tag = 'input window, operand 1, single buffered']
    #allocation4 [shape = 's32[1]{0}', space=sflag, size = 0x4, scoped, tag = 'scoped memory for tpu_custom_call.1']
    #allocation5 [shape = 's32[1]{0}', space=sflag, size = 0x4, scoped, tag = 'scoped memory for tpu_custom_call.1']
    #allocation6 [shape = 'u8[512]{0}', space=smem, size = 0x200, scoped, tag = 'input window, operand 2, single buffered']
    #allocation7 [shape = 's32[1]{0}', space=sflag, size = 0x4, scoped, tag = 'scoped memory for tpu_custom_call.1']
    #allocation8 [shape = 'u8[512]{0}', space=smem, size = 0x200, scoped, tag = 'input window, operand 3, single buffered']
    #allocation9 [shape = 'u8[4096]{0}', space=vmem, size = 0x1000, scoped, tag = 'output window, operand 0, single buffered']
    %10 = vsyncpa [#allocation5], 0
    %11 = vsyncpa [#allocation7], 0
    %12 = vsyncpa [#allocation4], 0
    // Predicated region
    $region2: #{tpu_custom_call.1} parent=1 // pred_check
      _
    $region3: #{tpu_custom_call.1} parent=1 // pred_check_branch
      %14 = sbr.rel (0) target = $region5
    $region4: #{tpu_custom_call.1} parent=1 // pred_region
      _
    $region5: #{tpu_custom_call.1} parent=1 // pred_fallthru
      _
    // Predicated region
    $region6: #{tpu_custom_call.1} parent=1 // pred_check
      _
    $region7: #{tpu_custom_call.1} parent=1 // pred_check_branch
      %16 = sbr.rel (0) target = $region9
    $region8: #{tpu_custom_call.1} parent=1 // pred_region
      %s18 = ssub.s32 16, 16
      %19 = vsyncadd [#allocation5], %s18
      %s21 = sshll.u32 %s1, 4
      %s22 = int_to_ptr.vmem [resolvable:$true] %s21
      %24 = dma.vmem_to_smem %s22, 16, [#allocation3], [#allocation5]
    $region9: #{tpu_custom_call.1} parent=1 // pred_fallthru
      _
    // Predicated region
    $region10: #{tpu_custom_call.1} parent=1 // pred_check
      _
    $region11: #{tpu_custom_call.1} parent=1 // pred_check_branch
      %26 = sbr.rel (0) target = $region13
    $region12: #{tpu_custom_call.1} parent=1 // pred_region
      %s28 = ssub.s32 16, 16
      %29 = vsyncadd [#allocation7], %s28
      %s31 = sshll.u32 %s2, 4
      %s32 = int_to_ptr.vmem [resolvable:$true] %s31
      %34 = dma.vmem_to_smem %s32, 16, [#allocation6], [#allocation7]
    $region13: #{tpu_custom_call.1} parent=1 // pred_fallthru
      _
    // Predicated region
    $region14: #{tpu_custom_call.1} parent=1 // pred_check
      _
    $region15: #{tpu_custom_call.1} parent=1 // pred_check_branch
      %36 = sbr.rel (0) target = $region17
    $region16: #{tpu_custom_call.1} parent=1 // pred_region
      %s38 = ssub.s32 16, 16
      %39 = vsyncadd [#allocation7], %s38
      %s41 = sshll.u32 %s3, 4
      %s42 = int_to_ptr.vmem [resolvable:$true] %s41
      %44 = dma.vmem_to_smem %s42, 16, [#allocation8], [#allocation7]
    $region17: #{tpu_custom_call.1} parent=1 // pred_fallthru
      _
    // Predicated region
    $region18: #{tpu_custom_call.1} parent=1 // pred_check
      _
    $region19: #{tpu_custom_call.1} parent=1 // pred_check_branch
      %46 = sbr.rel (0) target = $region21
    $region20: #{tpu_custom_call.1} parent=1 // pred_region
      %47 = dma.done [#allocation5], 16
    $region21: #{tpu_custom_call.1} parent=1 // pred_fallthru
      _
    // Predicated region
    $region22: #{tpu_custom_call.1} parent=1 // pred_check
      _
    $region23: #{tpu_custom_call.1} parent=1 // pred_check_branch
      %49 = sbr.rel (0) target = $region25
    $region24: #{tpu_custom_call.1} parent=1 // pred_region
      %50 = dma.done [#allocation7], 16
    $region25: #{tpu_custom_call.1} parent=1 // pred_fallthru
      _
    // Predicated region
    $region26: #{tpu_custom_call.1} parent=1 // pred_check
      _
    $region27: #{tpu_custom_call.1} parent=1 // pred_check_branch
      %52 = sbr.rel (0) target = $region29
    $region28: #{tpu_custom_call.1} parent=1 // pred_region
      %53 = dma.done [#allocation7], 16
    $region29: #{tpu_custom_call.1} parent=1 // pred_fallthru
      _
    %54 = sfence
    %s55 = sld [smem:[#allocation2]]
    %s56 = smul.u32 %s55, 3
    %s57 = sld [smem:[#allocation3 + %s56]]
    %s58 = sadd.s32 %s56, 1
    %s59 = sld [smem:[#allocation3 + %s58]]
    %s60 = sadd.s32 %s56, 2
    %s61 = sld [smem:[#allocation3 + %s60]]
    %s62 = sld [smem:[#allocation6 + %s56]]
    %s63 = sld [smem:[#allocation6 + %s58]]
    %s64 = sld [smem:[#allocation6 + %s60]]
    %s65 = smul.f32 %s57, %s57
    %s66 = smul.f32 %s59, %s59
    %s67 = sadd.f32 %s65, %s66
    %s68 = smul.f32 %s61, %s61
    %s69 = sadd.f32 %s67, %s68
    %v70 = vstv %s69
    %v71 = vrsqrt.pop %v70
    %v72 = vmul.f32 %v70, %v71
    %vm73 = vcmp.eq.f32.partialorder %v70, inf
    %v74 = vsel %vm73, %v70, %v72
    %vm75 = vcmp.eq.f32.partialorder %v70, 0.0
    %v76 = vand.u32 %v70, 2147483648
    %v77 = vsel %vm75, %v76, %v74
    %v78 = vadd.f32 %v77, 1e-15
    %v79 = vand.u32 2147483647, %v78
    %vm80 = vcmp.le.f32.partialorder %v79, 0.7853982
    %vm81 = vcmp.lt.s32.totalorder %v78, 0
    %v82 = vand.u32 %v78, 2139095040
    %v83 = vshrl.u32 %v82, 23
    %v84 = vsub.s32 %v83, 127
    %v85 = vand.u32 2147483647, %v78
    %v86 = vand.u32 %v85, 8388607
    %v87 = vor.u32 %v86, 8388608
    %v88 = vsub.s32 0, %v87
    %v89 = vadd.s32 %v84, 1
    %vm90 = vcmp.gt.s32.totalorder %v89, 0
    %v91 = vsel %vm90, %v89, 0
    %v92 = vshrl.u32 %v91, 5
    %v93 = vand.u32 %v91, 31
    %v94 = vsub.s32 32, %v93
    %v95 = vshrl.u32 683565275, %v94
    %v96 = vshll.u32 683565275, %v93
    %v97 = vshrl.u32 2475754826, %v94
    %v98 = vor.u32 %v96, %v97
    %v99 = vshll.u32 2475754826, %v93
    %v100 = vshrl.u32 2131351028, %v94
    %v101 = vor.u32 %v99, %v100
    %v102 = vshll.u32 2131351028, %v93
    %v103 = vshrl.u32 2102212464, %v94
    %v104 = vor.u32 %v102, %v103
    %v105 = vshll.u32 2102212464, %v93
    %v106 = vshrl.u32 920167782, %v94
    %v107 = vor.u32 %v105, %v106
    %v108 = vshll.u32 920167782, %v93
    %v109 = vshrl.u32 1326507024, %v94
    %v110 = vor.u32 %v108, %v109
    %vm111 = vcmp.lt.s32.totalorder %v92, 1
    %vm112 = vcmp.lt.s32.totalorder %v92, 2
    %vm113 = vcmp.lt.s32.totalorder %v92, 3
    %vm114 = vcmp.lt.s32.totalorder %v92, 4
    %v115 = vsel %vm111, %v95, %v98
    %v116 = vsel %vm114, %v104, 2102212464
    %v117 = vsel %vm113, %v101, %v116
    %v118 = vsel %vm112, %v115, %v117
    %v119 = vsel %vm111, %v98, %v101
    %v120 = vsel %vm114, %v107, 920167782
    %v121 = vsel %vm113, %v104, %v120
    %v122 = vsel %vm112, %v119, %v121
    %v123 = vsel %vm111, %v101, %v104
    %v124 = vsel %vm114, %v110, 1326507024
    %v125 = vsel %vm113, %v107, %v124
    %v126 = vsel %vm112, %v123, %v125
    %v127 = vshll.u32 %v87, 8
    %v128 = vmul.u32.u64.compose %v127, %v126
    %v129 = vextract.low.u32 %v128
    %v130 = vextract.high.u32 %v128
    %v131 = vmul.u32.u64.compose %v127, %v122
    %v132 = vextract.low.u32 %v131
    %v133 = vextract.high.u32 %v131
    %v134 = vmul.u32 %v127, %v118
    %v135 = vadd.s32 %v130, %v132
    %vm136 = vc.u32 %v130, %v132
    %v137 = vadd.s32 %v133, 1
    %v138 = vsel %vm136, %v137, %v133
    %v139 = vadd.s32 %v134, %v138
    %v140 = vadd.s32 %v139, 536870912
    %v141 = vshrl.u32 %v140, 30
    %v142 = vshll.u32 %v141, 30
    %v143 = vsub.s32 %v139, %v142
    %vm144 = vcmp.lt.s32.totalorder %v143, 0
    %v145 = vsub.s32 0, %v143
    %v146 = vsel %vm144, %v145, %v143
    %v147 = vclz %v146
    %v148 = vsub.s32 %v147, 2
    %vm149 = vcmp.gt.s32.totalorder 0, %v148
    %v150 = vsel %vm149, 0, %v148
    %v151 = vsub.s32 32, %v150
    %v152 = vshll.u32 %v143, %v150
    %v153 = vshrl.u32 %v135, %v151
    %v154 = vor.u32 %v152, %v153
    %v155 = vsub.s32 4294967266, %v150
    %v156 = vadd.s32 %v155, 127
    %v157 = vshll.u32 %v156, 23
    %v158 = vor.u32 4788187, %v157
    %v159 = vand.u32 2147483647, %v158
    %v161 = vcvt.s32.f32 %v154
    %v162 = vmul.f32 %v161, %v159
    %v163 = vxor.u32 %v162, 2147483648
    %v164 = vsel %vm81, %v163, %v162
    %v165 = vsub.s32 4, %v141
    %v166 = vsel %vm81, %v165, %v141
    %v167 = vsel %vm80, %v78, %v164
    %v168 = vsel %vm80, 0, %v166
    %v169 = vcosq.f32.pop %v167
    %v170 = vsinq.f32.pop %v167
    %vm171 = vweird.f32 %v78
    %v172 = vadd.s32 %v168, 3
    %v173 = vand.u32 %v172, 3
    %vm174 = vcmp.lt.s32.totalorder %v173, 2
    %vm175 = vcmp.eq.s32.totalorder %v173, 0
    %v176 = vxor.u32 %v170, 2147483648
    %v177 = vsel %vm175, %v169, %v176
    %vm178 = vcmp.eq.s32.totalorder %v173, 2
    %v179 = vxor.u32 %v169, 2147483648
    %v180 = vsel %vm178, %v179, %v170
    %v181 = vsel %vm174, %v177, %v180
    %v182 = vsel %vm171, nan, %v181
    %v183 = vrcp.pop %v78
    %v184 = vmul.f32 %v182, %v183
    %v185 = vand.u32 2147483647, %v78
    %vm186 = vcmp.le.f32.partialorder %v185, 0.7853982
    %vm187 = vcmp.lt.s32.totalorder %v78, 0
    %v188 = vand.u32 %v78, 2139095040
    %v189 = vshrl.u32 %v188, 23
    %v190 = vsub.s32 %v189, 127
    %v191 = vand.u32 2147483647, %v78
    %v192 = vand.u32 %v191, 8388607
    %v193 = vor.u32 %v192, 8388608
    %v194 = vsub.s32 0, %v193
    %v195 = vadd.s32 %v190, 1
    %vm196 = vcmp.gt.s32.totalorder %v195, 0
    %v197 = vsel %vm196, %v195, 0
    %v198 = vshrl.u32 %v197, 5
    %v199 = vand.u32 %v197, 31
    %v200 = vsub.s32 32, %v199
    %v201 = vshrl.u32 683565275, %v200
    %v202 = vshll.u32 683565275, %v199
    %v203 = vshrl.u32 2475754826, %v200
    %v204 = vor.u32 %v202, %v203
    %v205 = vshll.u32 2475754826, %v199
    %v206 = vshrl.u32 2131351028, %v200
    %v207 = vor.u32 %v205, %v206
    %v208 = vshll.u32 2131351028, %v199
    %v209 = vshrl.u32 2102212464, %v200
    %v210 = vor.u32 %v208, %v209
    %v211 = vshll.u32 2102212464, %v199
    %v212 = vshrl.u32 920167782, %v200
    %v213 = vor.u32 %v211, %v212
    %v214 = vshll.u32 920167782, %v199
    %v215 = vshrl.u32 1326507024, %v200
    %v216 = vor.u32 %v214, %v215
    %vm217 = vcmp.lt.s32.totalorder %v198, 1
    %vm218 = vcmp.lt.s32.totalorder %v198, 2
    %vm219 = vcmp.lt.s32.totalorder %v198, 3
    %vm220 = vcmp.lt.s32.totalorder %v198, 4
    %v221 = vsel %vm217, %v201, %v204
    %v222 = vsel %vm220, %v210, 2102212464
    %v223 = vsel %vm219, %v207, %v222
    %v224 = vsel %vm218, %v221, %v223
    %v225 = vsel %vm217, %v204, %v207
    %v226 = vsel %vm220, %v213, 920167782
    %v227 = vsel %vm219, %v210, %v226
    %v228 = vsel %vm218, %v225, %v227
    %v229 = vsel %vm217, %v207, %v210
    %v230 = vsel %vm220, %v216, 1326507024
    %v231 = vsel %vm219, %v213, %v230
    %v232 = vsel %vm218, %v229, %v231
    %v233 = vshll.u32 %v193, 8
    %v234 = vmul.u32.u64.compose %v233, %v232
    %v235 = vextract.low.u32 %v234
    %v236 = vextract.high.u32 %v234
    %v237 = vmul.u32.u64.compose %v233, %v228
    %v238 = vextract.low.u32 %v237
    %v239 = vextract.high.u32 %v237
    %v240 = vmul.u32 %v233, %v224
    %v241 = vadd.s32 %v236, %v238
    %vm242 = vc.u32 %v236, %v238
    %v243 = vadd.s32 %v239, 1
    %v244 = vsel %vm242, %v243, %v239
    %v245 = vadd.s32 %v240, %v244
    %v246 = vadd.s32 %v245, 536870912
    %v247 = vshrl.u32 %v246, 30
    %v248 = vshll.u32 %v247, 30
    %v249 = vsub.s32 %v245, %v248
    %vm250 = vcmp.lt.s32.totalorder %v249, 0
    %v251 = vsub.s32 0, %v249
    %v252 = vsel %vm250, %v251, %v249
    %v253 = vclz %v252
    %v254 = vsub.s32 %v253, 2
    %vm255 = vcmp.gt.s32.totalorder 0, %v254
    %v256 = vsel %vm255, 0, %v254
    %v257 = vsub.s32 32, %v256
    %v258 = vshll.u32 %v249, %v256
    %v259 = vshrl.u32 %v241, %v257
    %v260 = vor.u32 %v258, %v259
    %v261 = vsub.s32 4294967266, %v256
    %v262 = vadd.s32 %v261, 127
    %v263 = vshll.u32 %v262, 23
    %v264 = vor.u32 4788187, %v263
    %v265 = vand.u32 2147483647, %v264
    %v267 = vcvt.s32.f32 %v260
    %v268 = vmul.f32 %v267, %v265
    %v269 = vxor.u32 %v268, 2147483648
    %v270 = vsel %vm187, %v269, %v268
    %v271 = vsub.s32 4, %v247
    %v272 = vsel %vm187, %v271, %v247
    %v273 = vsel %vm186, %v78, %v270
    %v274 = vsel %vm186, 0, %v272
    %v275 = vcosq.f32.pop %v273
    %v276 = vsinq.f32.pop %v273
    %vm277 = vweird.f32 %v78
    %v278 = vand.u32 %v274, 3
    %vm279 = vcmp.lt.s32.totalorder %v278, 2
    %vm280 = vcmp.eq.s32.totalorder %v278, 0
    %v281 = vxor.u32 %v276, 2147483648
    %v282 = vsel %vm280, %v275, %v281
    %vm283 = vcmp.eq.s32.totalorder %v278, 2
    %v284 = vxor.u32 %v275, 2147483648
    %v285 = vsel %vm283, %v284, %v276
    %v286 = vsel %vm279, %v282, %v285
    %v287 = vsel %vm277, nan, %v286
    %v288 = vsub.f32 1.0, %v287
    %v289 = vmul.f32 %v78, %v78
    %v290 = vrcp.pop %v289
    %v291 = vmul.f32 %v288, %v290
    %s292 = ssub.f32 0.0, %s61
    %s293 = ssub.f32 0.0, %s57
    %s294 = ssub.f32 0.0, %s59
    %s295 = sadd.f32 %s66, %s68
    %s296 = ssub.f32 0.0, %s295
    %s297 = smul.f32 %s57, %s59
    %s298 = smul.f32 %s57, %s61
    %s299 = sadd.f32 %s65, %s68
    %s300 = ssub.f32 0.0, %s299
    %s301 = smul.f32 %s59, %s61
    %s302 = ssub.f32 0.0, %s67
    %s303 = smul.u32 %s55, 16
    %s304 = sld [smem:[#allocation8 + %s303]]
    %s305 = sadd.s32 %s303, 1
    %s306 = sld [smem:[#allocation8 + %s305]]
    %s307 = sadd.s32 %s303, 2
    %s308 = sld [smem:[#allocation8 + %s307]]
    %s309 = sadd.s32 %s303, 3
    %s310 = sld [smem:[#allocation8 + %s309]]
    %s311 = sadd.s32 %s303, 4
    %s312 = sld [smem:[#allocation8 + %s311]]
    %s313 = sadd.s32 %s303, 5
    %s314 = sld [smem:[#allocation8 + %s313]]
    %s315 = sadd.s32 %s303, 6
    %s316 = sld [smem:[#allocation8 + %s315]]
    %s317 = sadd.s32 %s303, 7
    %s318 = sld [smem:[#allocation8 + %s317]]
    %s319 = sadd.s32 %s303, 8
    %s320 = sld [smem:[#allocation8 + %s319]]
    %s321 = sadd.s32 %s303, 9
    %s322 = sld [smem:[#allocation8 + %s321]]
    %s323 = sadd.s32 %s303, 10
    %s324 = sld [smem:[#allocation8 + %s323]]
    %s325 = sadd.s32 %s303, 11
    %s326 = sld [smem:[#allocation8 + %s325]]
    %s327 = sadd.s32 %s303, 12
    %s328 = sld [smem:[#allocation8 + %s327]]
    %s329 = sadd.s32 %s303, 13
    %s330 = sld [smem:[#allocation8 + %s329]]
    %s331 = sadd.s32 %s303, 14
    %s332 = sld [smem:[#allocation8 + %s331]]
    %s333 = sadd.s32 %s303, 15
    %s334 = sld [smem:[#allocation8 + %s333]]
    %s335 = smul.f32 %s62, %s328
    %s336 = sadd.f32 %s304, %s335
    %s337 = smul.f32 %s62, %s330
    %s338 = sadd.f32 %s306, %s337
    %s339 = smul.f32 %s62, %s332
    %s340 = sadd.f32 %s308, %s339
    %s341 = smul.f32 %s62, %s334
    %s342 = sadd.f32 %s310, %s341
    %s343 = smul.f32 %s63, %s328
    %s344 = sadd.f32 %s312, %s343
    %s345 = smul.f32 %s63, %s330
    %s346 = sadd.f32 %s314, %s345
    %s347 = smul.f32 %s63, %s332
    %s348 = sadd.f32 %s316, %s347
    %s349 = smul.f32 %s63, %s334
    %s350 = sadd.f32 %s318, %s349
    %s351 = smul.f32 %s64, %s328
    %s352 = sadd.f32 %s320, %s351
    %s353 = smul.f32 %s64, %s330
    %s354 = sadd.f32 %s322, %s353
    %s355 = smul.f32 %s64, %s332
    %s356 = sadd.f32 %s324, %s355
    %s357 = smul.f32 %s64, %s334
    %s358 = sadd.f32 %s326, %s357
    %s359 = smul.f32 %s304, 0.0
    %s360 = smul.f32 %s292, %s312
    %s361 = sadd.f32 %s359, %s360
    %s362 = smul.f32 %s59, %s320
    %s363 = sadd.f32 %s361, %s362
    %s364 = smul.f32 %s306, 0.0
    %s365 = smul.f32 %s292, %s314
    %s366 = sadd.f32 %s364, %s365
    %s367 = smul.f32 %s59, %s322
    %s368 = sadd.f32 %s366, %s367
    %s369 = smul.f32 %s308, 0.0
    %s370 = smul.f32 %s292, %s316
    %s371 = sadd.f32 %s369, %s370
    %s372 = smul.f32 %s59, %s324
    %s373 = sadd.f32 %s371, %s372
    %s374 = smul.f32 %s310, 0.0
    %s375 = smul.f32 %s292, %s318
    %s376 = sadd.f32 %s374, %s375
    %s377 = smul.f32 %s59, %s326
    %s378 = sadd.f32 %s376, %s377
    %s379 = smul.f32 %s61, %s304
    %s380 = smul.f32 %s312, 0.0
    %s381 = sadd.f32 %s379, %s380
    %s382 = smul.f32 %s293, %s320
    %s383 = sadd.f32 %s381, %s382
    %s384 = smul.f32 %s61, %s306
    %s385 = smul.f32 %s314, 0.0
    %s386 = sadd.f32 %s384, %s385
    %s387 = smul.f32 %s293, %s322
    %s388 = sadd.f32 %s386, %s387
    %s389 = smul.f32 %s61, %s308
    %s390 = smul.f32 %s316, 0.0
    %s391 = sadd.f32 %s389, %s390
    %s392 = smul.f32 %s293, %s324
    %s393 = sadd.f32 %s391, %s392
    %s394 = smul.f32 %s61, %s310
    %s395 = smul.f32 %s318, 0.0
    %s396 = sadd.f32 %s394, %s395
    %s397 = smul.f32 %s293, %s326
    %s398 = sadd.f32 %s396, %s397
    %s399 = smul.f32 %s294, %s304
    %s400 = smul.f32 %s57, %s312
    %s401 = sadd.f32 %s399, %s400
    %s402 = smul.f32 %s320, 0.0
    %s403 = sadd.f32 %s401, %s402
    %s404 = smul.f32 %s294, %s306
    %s405 = smul.f32 %s57, %s314
    %s406 = sadd.f32 %s404, %s405
    %s407 = smul.f32 %s322, 0.0
    %s408 = sadd.f32 %s406, %s407
    %s409 = smul.f32 %s294, %s308
    %s410 = smul.f32 %s57, %s316
    %s411 = sadd.f32 %s409, %s410
    %s412 = smul.f32 %s324, 0.0
    %s413 = sadd.f32 %s411, %s412
    %s414 = smul.f32 %s294, %s310
    %s415 = smul.f32 %s57, %s318
    %s416 = sadd.f32 %s414, %s415
    %s417 = smul.f32 %s326, 0.0
    %s418 = sadd.f32 %s416, %s417
    %s419 = smul.f32 %s296, %s304
    %s420 = smul.f32 %s297, %s312
    %s421 = sadd.f32 %s419, %s420
    %s422 = smul.f32 %s298, %s320
    %s423 = sadd.f32 %s421, %s422
    %s424 = smul.f32 %s296, %s306
    %s425 = smul.f32 %s297, %s314
    %s426 = sadd.f32 %s424, %s425
    %s427 = smul.f32 %s298, %s322
    %s428 = sadd.f32 %s426, %s427
    %s429 = smul.f32 %s296, %s308
    %s430 = smul.f32 %s297, %s316
    %s431 = sadd.f32 %s429, %s430
    %s432 = smul.f32 %s298, %s324
    %s433 = sadd.f32 %s431, %s432
    %s434 = smul.f32 %s296, %s310
    %s435 = smul.f32 %s297, %s318
    %s436 = sadd.f32 %s434, %s435
    %s437 = smul.f32 %s298, %s326
    %s438 = sadd.f32 %s436, %s437
    %s439 = smul.f32 %s297, %s304
    %s440 = smul.f32 %s300, %s312
    %s441 = sadd.f32 %s439, %s440
    %s442 = smul.f32 %s301, %s320
    %s443 = sadd.f32 %s441, %s442
    %s444 = smul.f32 %s297, %s306
    %s445 = smul.f32 %s300, %s314
    %s446 = sadd.f32 %s444, %s445
    %s447 = smul.f32 %s301, %s322
    %s448 = sadd.f32 %s446, %s447
    %s449 = smul.f32 %s297, %s308
    %s450 = smul.f32 %s300, %s316
    %s451 = sadd.f32 %s449, %s450
    %s452 = smul.f32 %s301, %s324
    %s453 = sadd.f32 %s451, %s452
    %s454 = smul.f32 %s297, %s310
    %s455 = smul.f32 %s300, %s318
    %s456 = sadd.f32 %s454, %s455
    %s457 = smul.f32 %s301, %s326
    %s458 = sadd.f32 %s456, %s457
    %s459 = smul.f32 %s298, %s304
    %s460 = smul.f32 %s301, %s312
    %s461 = sadd.f32 %s459, %s460
    %s462 = smul.f32 %s302, %s320
    %s463 = sadd.f32 %s461, %s462
    %s464 = smul.f32 %s298, %s306
    %s465 = smul.f32 %s301, %s314
    %s466 = sadd.f32 %s464, %s465
    %s467 = smul.f32 %s302, %s322
    %s468 = sadd.f32 %s466, %s467
    %s469 = smul.f32 %s298, %s308
    %s470 = smul.f32 %s301, %s316
    %s471 = sadd.f32 %s469, %s470
    %s472 = smul.f32 %s302, %s324
    %s473 = sadd.f32 %s471, %s472
    %s474 = smul.f32 %s298, %s310
    %s475 = smul.f32 %s301, %s318
    %s476 = sadd.f32 %s474, %s475
    %s477 = smul.f32 %s302, %s326
    %s478 = sadd.f32 %s476, %s477
    %v479 = vlaneseq
    %v480 = vshrl.u32 %v479, 7
    %v481 = vlaneseq
    %v482 = vand.u32 %v481, 127
    %vm483 = vcmp.eq.s32.totalorder %v480, 0
    %vm484 = vcmp.eq.s32.totalorder %v480, 1
    %vm485 = vcmp.eq.s32.totalorder %v480, 2
    %vm486 = vcmp.eq.s32.totalorder %v480, 3
    %vm487 = vcmp.eq.s32.totalorder %v482, 0
    %vm488 = vcmp.eq.s32.totalorder %v482, 1
    %vm489 = vcmp.eq.s32.totalorder %v482, 2
    %vm490 = vcmp.eq.s32.totalorder %v482, 3
    %vm491 = vmand %vm483, %vm487
    %v492 = vstv %s336
    %v493 = vsel %vm491, %v492, 0.0
    %vm494 = vmand %vm483, %vm488
    %v495 = vstv %s338
    %v496 = vsel %vm494, %v495, %v493
    %vm497 = vmand %vm483, %vm489
    %v498 = vstv %s340
    %v499 = vsel %vm497, %v498, %v496
    %vm500 = vmand %vm483, %vm490
    %v501 = vstv %s342
    %v502 = vsel %vm500, %v501, %v499
    %vm503 = vmand %vm484, %vm487
    %v504 = vstv %s344
    %v505 = vsel %vm503, %v504, %v502
    %vm506 = vmand %vm484, %vm488
    %v507 = vstv %s346
    %v508 = vsel %vm506, %v507, %v505
    %vm509 = vmand %vm484, %vm489
    %v510 = vstv %s348
    %v511 = vsel %vm509, %v510, %v508
    %vm512 = vmand %vm484, %vm490
    %v513 = vstv %s350
    %v514 = vsel %vm512, %v513, %v511
    %vm515 = vmand %vm485, %vm487
    %v516 = vstv %s352
    %v517 = vsel %vm515, %v516, %v514
    %vm518 = vmand %vm485, %vm488
    %v519 = vstv %s354
    %v520 = vsel %vm518, %v519, %v517
    %vm521 = vmand %vm485, %vm489
    %v522 = vstv %s356
    %v523 = vsel %vm521, %v522, %v520
    %vm524 = vmand %vm485, %vm490
    %v525 = vstv %s358
    %v526 = vsel %vm524, %v525, %v523
    %vm527 = vmand %vm486, %vm487
    %v528 = vstv %s328
    %v529 = vsel %vm527, %v528, %v526
    %vm530 = vmand %vm486, %vm488
    %v531 = vstv %s330
    %v532 = vsel %vm530, %v531, %v529
    %vm533 = vmand %vm486, %vm489
    %v534 = vstv %s332
    %v535 = vsel %vm533, %v534, %v532
    %vm536 = vmand %vm486, %vm490
    %v537 = vstv %s334
    %v538 = vsel %vm536, %v537, %v535
    %v539 = vstv %s363
    %v540 = vsel %vm491, %v539, 0.0
    %v541 = vstv %s368
    %v542 = vsel %vm494, %v541, %v540
    %v543 = vstv %s373
    %v544 = vsel %vm497, %v543, %v542
    %v545 = vstv %s378
    %v546 = vsel %vm500, %v545, %v544
    %v547 = vstv %s383
    %v548 = vsel %vm503, %v547, %v546
    %v549 = vstv %s388
    %v550 = vsel %vm506, %v549, %v548
    %v551 = vstv %s393
    %v552 = vsel %vm509, %v551, %v550
    %v553 = vstv %s398
    %v554 = vsel %vm512, %v553, %v552
    %v555 = vstv %s403
    %v556 = vsel %vm515, %v555, %v554
    %v557 = vstv %s408
    %v558 = vsel %vm518, %v557, %v556
    %v559 = vstv %s413
    %v560 = vsel %vm521, %v559, %v558
    %v561 = vstv %s418
    %v562 = vsel %vm524, %v561, %v560
    %v563 = vmul.f32 %v184, %v562
    %v564 = vadd.f32 %v538, %v563
    %v565 = vstv %s423
    %v566 = vsel %vm491, %v565, 0.0
    %v567 = vstv %s428
    %v568 = vsel %vm494, %v567, %v566
    %v569 = vstv %s433
    %v570 = vsel %vm497, %v569, %v568
    %v571 = vstv %s438
    %v572 = vsel %vm500, %v571, %v570
    %v573 = vstv %s443
    %v574 = vsel %vm503, %v573, %v572
    %v575 = vstv %s448
    %v576 = vsel %vm506, %v575, %v574
    %v577 = vstv %s453
    %v578 = vsel %vm509, %v577, %v576
    %v579 = vstv %s458
    %v580 = vsel %vm512, %v579, %v578
    %v581 = vstv %s463
    %v582 = vsel %vm515, %v581, %v580
    %v583 = vstv %s468
    %v584 = vsel %vm518, %v583, %v582
    %v585 = vstv %s473
    %v586 = vsel %vm521, %v585, %v584
    %v587 = vstv %s478
    %v588 = vsel %vm524, %v587, %v586
    %v589 = vmul.f32 %v291, %v588
    %v590 = vadd.f32 %v564, %v589
    %591 = vst [vmem:[#allocation9] sm:$0xff] %v590
    // Predicated region
    $region30: #{tpu_custom_call.1} parent=1 // pred_check
      _
    $region31: #{tpu_custom_call.1} parent=1 // pred_check_branch
      %593 = sbr.rel (0) target = $region33
    $region32: #{tpu_custom_call.1} parent=1 // pred_region
      %s595 = ssub.s32 128, 128
      %596 = vsyncadd [#allocation4], %s595
      %s598 = sshll.u32 [#allocation9], 4
      %s599 = int_to_ptr.vmem [resolvable:$true] %s598
      %601 = dma.vmem_to_hbm [thread:$0]  %s599, 128, %s4, [#allocation4]
    $region33: #{tpu_custom_call.1} parent=1 // pred_fallthru
      _
    // Predicated region
    $region34: #{tpu_custom_call.1} parent=1 // pred_check
      _
    $region35: #{tpu_custom_call.1} parent=1 // pred_check_branch
      %603 = sbr.rel (0) target = $region37
    $region36: #{tpu_custom_call.1} parent=1 // pred_region
      %604 = dma.done [#allocation4], 128
    $region37: #{tpu_custom_call.1} parent=1 // pred_fallthru
      _
    %605 = vsyncpa [#allocation4], 1
    %606 = vsyncpa [#allocation5], 1
    %607 = vsyncpa [#allocation7], 1

</llo_original>
